<compile_context>
chip_gen: v7x
topology: tpu7x:2x2x1
jax: 0.10.0
libtpu: 0.0.40
codegen_flags: <defaults>
</compile_context>

<pallas_src>
import jax
import jax.numpy as jnp
from jax import lax
from jax.experimental import pallas as pl
from jax.experimental.pallas import tpu as pltpu


# ---------------------------------------------------------------------------
# Fused kernel: [conv3x3+bias+ReLU] -> [conv3x3+bias+ReLU] for Bt batch elems.
# Rows live on the sublane axis, (width x channels) flattened on lanes.
# ---------------------------------------------------------------------------
def _fused_progressive_kernel(x_ref, w0_ref, b0_ref, w1_ref, b1_ref, o_ref,
                              xcat_ref, apad_ref):
    # Shapes (K0 = W*Cin, N = W*C, S = H+2, M = Bt*S):
    #   x_ref   : (Bt, H, K0)  f32   lane-flattened NHWC input block
    #   w0_ref  : (3*K0, N)    bf16  layer-0 banded weights, ky-stacked along K
    #   b0_ref  : (1, N)       f32
    #   w1_ref  : (3, N, N)    bf16  layer-1 banded weights (one band per ky)
    #   b1_ref  : (1, N)       f32
    #   o_ref   : (Bt, H, N)   f32   lane-dense output block
    #   xcat_ref: (M, 3*K0)    f32   row-im2col slab (vertical halo + 3 ky shifts)
    #   apad_ref: (M, N)       f32   vertically padded layer-0 activations
    Bt, H, K0 = x_ref.shape
    N = o_ref.shape[2]
    S = H + 2
    M = Bt * S
    Mv = M - 2

    # ---- layer 0 ------------------------------------------------------------
    # Re-zero the slab every step (per-core scratch is uninitialized), then drop
    # each batch element's rows in with a 1-row zero halo above/below.
    xcat_ref[...] = jnp.zeros(xcat_ref.shape, xcat_ref.dtype)
    for b in range(Bt):
        xcat_ref[pl.ds(b * S + 1, H), 0:K0] = x_ref[b].astype(xcat_ref.dtype)
    # ky = 1, 2 shifted copies of the (already halo-padded) ky = 0 column block:
    # one MXU matmul with K = 3*K0 instead of three K = K0 matmuls.
    xcat_ref[pl.ds(0, M - 1), K0:2 * K0] = xcat_ref[pl.ds(1, M - 1), 0:K0]
    xcat_ref[pl.ds(0, M - 2), 2 * K0:3 * K0] = xcat_ref[pl.ds(2, M - 2), 0:K0]

    a = jnp.dot(xcat_ref[...].astype(w0_ref.dtype), w0_ref[...],
                preferred_element_type=jnp.float32)
    a = jnp.maximum(a + b0_ref[...], 0.0)      # (M, N); rows b*S+H, b*S+H+1 are junk

    # ---- layer 1 (intermediate stays VMEM-resident) -------------------------
    # apad[b*S+1 .. b*S+H] = a[b*S .. b*S+H-1]; halo rows are zeroed afterwards.
    # The junk rows of `a` land exactly on those halo rows, so they are wiped.
    apad_ref[pl.ds(1, M - 1), :] = a[0:M - 1, :].astype(apad_ref.dtype)
    zero_row = jnp.zeros((1, N), apad_ref.dtype)
    for b in range(Bt):
        apad_ref[pl.ds(b * S, 1), :] = zero_row
        apad_ref[pl.ds(b * S + H + 1, 1), :] = zero_row

    # K = 256 already fills the MXU contraction on v6e/v7x, so keep 3 matmuls
    # here; accumulator is initialized from the first matmul (no zeros + +=).
    acc = jnp.dot(apad_ref[pl.ds(0, Mv), :].astype(w1_ref.dtype), w1_ref[0],
                  preferred_element_type=jnp.float32)
    acc += jnp.dot(apad_ref[pl.ds(1, Mv), :].astype(w1_ref.dtype), w1_ref[1],
                   preferred_element_type=jnp.float32)
    acc += jnp.dot(apad_ref[pl.ds(2, Mv), :].astype(w1_ref.dtype), w1_ref[2],
                   preferred_element_type=jnp.float32)
    y = jnp.maximum(acc + b1_ref[...], 0.0)    # (Mv, N); valid rows at b*S + r

    for b in range(Bt):
        o_ref[b] = y[b * S:b * S + H, :].astype(o_ref.dtype)


# ---------------------------------------------------------------------------
# Hoisted weight prep (call once; reused by every forward call).
# ---------------------------------------------------------------------------
def _band_weights(w, width):
    """(3,3,Cin,Cout) HWIO conv weights -> (3, W*Cin, W*Cout) banded matrices.

    band[ky][wi*Cin+ci, wo*Cout+co] = w[ky, wi-wo+1, ci, co] (0 elsewhere), so
    horizontal same-padding is encoded in the band structure.
    """
    kh, kw, cin, cout = w.shape
    wi = jnp.arange(width)[:, None, None]
    wo = jnp.arange(width)[None, :, None]
    kx = jnp.arange(kw)[None, None, :]
    sel = (wi == wo + kx - 1).astype(w.dtype)            # (W, W, 3)
    band = jnp.einsum('iok,ykcd->yicod', sel, w)         # (3, W, Cin, W, Cout)
    return band.reshape(kh, width * cin, width * cout)


def prepare_progressive_params(params, width, compute_dtype=jnp.bfloat16):
    """Stack blocksets, build banded matrices, tile biases, cast to bf16.

    This is the expensive (HBM-heavy) part of the old per-call path; weights are
    static at inference so it is done once and amortized over every forward.
    """
    w_p0, b_p0 = params['prior_l0']
    w_p1, b_p1 = params['prior_l1']
    w_c0, b_c0 = params['curr_l0']
    w_c1, b_c1 = params['curr_l1']
    c1 = w_p0.shape[-1]                                  # per-block out channels (8)
    c = 2 * c1                                           # stacked out channels (16)

    w0 = jnp.concatenate([w_p0, w_c0], axis=-1)          # (3,3,Cin,16)
    b0 = jnp.concatenate([b_p0, b_c0], axis=0)           # (16,)
    w1 = jnp.zeros((3, 3, c, c), w_p1.dtype)
    w1 = w1.at[:, :, :c1, :c1].set(w_p1)                 # prior_l1 sees a0 only
    w1 = w1.at[:, :, :, c1:].set(w_c1)                   # curr_l1 sees [a0, a1]
    b1 = jnp.concatenate([b_p1, b_c1], axis=0)           # (16,)

    cin = w0.shape[2]
    k0 = width * cin
    n = width * c
    # Layer-0 band is ky-stacked along K so the kernel runs one K=3*K0 matmul.
    w0_band = _band_weights(w0, width).reshape(3 * k0, n).astype(compute_dtype)
    w1_band = _band_weights(w1, width).astype(compute_dtype)          # (3, N, N)
    b0_t = jnp.tile(b0, (width,)).reshape(1, n).astype(jnp.float32)
    b1_t = jnp.tile(b1, (width,)).reshape(1, n).astype(jnp.float32)
    return {'w0_band': w0_band, 'b0': b0_t, 'w1_band': w1_band, 'b1': b1_t}


# ---------------------------------------------------------------------------
# Forward wrappers.
# ---------------------------------------------------------------------------
def progressive_nn_forward_nhwc(x_nhwc, prep, *, block_b=None):
    """NHWC-native forward (no layout transposes around the pallas_call)."""
    B, H, W, Cin = x_nhwc.shape
    K0 = W * Cin
    N = prep['w0_band'].shape[1]
    C = N // W

    if block_b is None:
        # Fold batch elements into the MXU M dimension (target >= 128 rows),
        # keeping block_b a divisor of B.
        cap = max(1, -(-128 // (H + 2)))
        block_b = max(d for d in range(1, min(B, cap) + 1) if B % d == 0)
    assert B % block_b == 0, (B, block_b)
    Bt = block_b
    M = Bt * (H + 2)

    x_flat = x_nhwc.reshape(B, H, K0)          # contiguous dim-collapse (free)

    w_bytes = (prep['w0_band'].size * prep['w0_band'].dtype.itemsize
               + prep['w1_band'].size * prep['w1_band'].dtype.itemsize)
    flops = 2 * B * (H + 2) * N * (3 * K0 + 3 * N)
    bytes_accessed = (x_flat.size * x_flat.dtype.itemsize + w_bytes
                      + 2 * N * 4 + B * H * N * 4)

    out_flat = pl.pallas_call(
        _fused_progressive_kernel,
        out_shape=jax.ShapeDtypeStruct((B, H, N), jnp.float32),
        grid_spec=pltpu.PrefetchScalarGridSpec(
            num_scalar_prefetch=0,
            grid=(B // Bt,),
            in_specs=[
                pl.BlockSpec((Bt, H, K0), lambda g: (g, 0, 0)),
                pl.BlockSpec((3 * K0, N), lambda g: (0, 0)),
                pl.BlockSpec((1, N), lambda g: (0, 0)),
                pl.BlockSpec((3, N, N), lambda g: (0, 0, 0)),
                pl.BlockSpec((1, N), lambda g: (0, 0)),
            ],
            out_specs=pl.BlockSpec((Bt, H, N), lambda g: (g, 0, 0)),
            scratch_shapes=[
                pltpu.VMEM((M, 3 * K0), jnp.float32),   # row-im2col slab
                pltpu.VMEM((M, N), jnp.float32),        # padded layer-0 acts
            ],
        ),
        compiler_params=pltpu.CompilerParams(
            dimension_semantics=("parallel",)),
        cost_estimate=pl.CostEstimate(flops=int(flops), transcendentals=0,
                                      bytes_accessed=int(bytes_accessed)),
    )(x_flat, prep['w0_band'], prep['b0'], prep['w1_band'], prep['b1'])

    return out_flat.reshape(B, H, W, C)                  # NHWC, channels [y0 | y1]


def progressive_nn_forward(x_nchw, prep, *, block_b=None):
    """NCHW compatibility shim (matches the PyTorch module's layout).

    Callers that keep activations NHWC should use progressive_nn_forward_nhwc
    directly and skip both transposes (each is a standalone XLA op with an HBM
    round trip larger than the kernel's own traffic).
    """
    x_nhwc = jnp.transpose(x_nchw, (0, 2, 3, 1))
    out_nhwc = progressive_nn_forward_nhwc(x_nhwc, prep, block_b=block_b)
    return jnp.transpose(out_nhwc, (0, 3, 1, 2))
    # TODO(synk): progress()/prune() (training-time block growth & pruning) have
    # no forward-pass compute and are not kernelized.


# ---------------------------------------------------------------------------
# Pure-JAX reference (for correctness check).
# ---------------------------------------------------------------------------
def _conv_ref(x_nhwc, w, b):
    y = lax.conv_general_dilated(
        x_nhwc, w, window_strides=(1, 1), padding='SAME',
        dimension_numbers=('NHWC', 'HWIO', 'NHWC'))
    return jnp.maximum(y + b, 0.0)


def _forward_ref(x_nchw, params, compute_dtype=jnp.float32):
    """Reference forward.  With compute_dtype=bfloat16 this mimics the kernel's
    quantization points (input, weights, layer-0 activations) exactly, so the
    kernel can be checked to tight tolerances even in bf16 mode."""
    q = lambda t: t.astype(compute_dtype).astype(jnp.float32)
    x = q(jnp.transpose(x_nchw, (0, 2, 3, 1)))
    conv = lambda xi, wb: _conv_ref(xi, q(wb[0]), wb[1])
    a0 = conv(x, params['prior_l0'])
    a1 = conv(x, params['curr_l0'])
    a0, a1 = q(a0), q(a1)
    y0 = conv(a0, params['prior_l1'])
    y1 = conv(jnp.concatenate([a0, a1], axis=-1), params['curr_l1'])
    out = jnp.concatenate([y0, y1], axis=-1)
    return jnp.transpose(out, (0, 3, 1, 2))


def _init_conv(key, cin, cout):
    kw, kb = jax.random.split(key)
    fan_in = cin * 9
    bound = 1.0 / jnp.sqrt(fan_in)
    w = jax.random.uniform(kw, (3, 3, cin, cout), jnp.float32, -bound, bound)
    b = jax.random.uniform(kb, (cout,), jnp.float32, -bound, bound)
    return w, b


if __name__ == "__main__":
    key = jax.random.PRNGKey(0)
    kx, k0, k1, k2, k3 = jax.random.split(key, 5)

    B, C, H, W = 2, 4, 16, 16
    CH = 8                                    # per-block output channels
    x = jax.random.normal(kx, (B, C, H, W), jnp.float32)

    params = {
        'prior_l0': _init_conv(k0, C, CH),          # 4  -> 8
        'prior_l1': _init_conv(k1, CH, CH),         # 8  -> 8
        'curr_l0':  _init_conv(k2, C, CH),          # 4  -> 8
        'curr_l1':  _init_conv(k3, 2 * CH, CH),     # 16 -> 8
    }

    # Weight prep hoisted out of the forward: done exactly once.
    prep = prepare_progressive_params(params, W, compute_dtype=jnp.bfloat16)
    fwd = jax.jit(progressive_nn_forward)

    out = jax.block_until_ready(fwd(x, prep))

    ref_q = _forward_ref(x, params, jnp.bfloat16)   # kernel-precision reference
    ref_f = _forward_ref(x, params, jnp.float32)    # exact module reference

    assert out.shape == (B, 2 * CH, H, W), out.shape
    assert jnp.allclose(out, ref_q, rtol=2e-3, atol=2e-3), \
        float(jnp.max(jnp.abs(out - ref_q)))
    assert jnp.allclose(out, ref_f, rtol=0.0, atol=1e-1), \
        float(jnp.max(jnp.abs(out - ref_f)))
    print("KERNEL_OK")
</pallas_src>

<mosaic_0001>
module attributes {stable_mosaic.version = 11 : i64} {
  func.func @_fused_progressive_kernel(%arg0: i32, %arg1: memref<2x16x64xf32, #tpu.memory_space<vmem>>, %arg2: memref<192x256xbf16, #tpu.memory_space<vmem>>, %arg3: memref<1x256xf32, #tpu.memory_space<vmem>>, %arg4: memref<3x256x256xbf16, #tpu.memory_space<vmem>>, %arg5: memref<1x256xf32, #tpu.memory_space<vmem>>, %arg6: memref<2x16x256xf32, #tpu.memory_space<vmem>>, %arg7: memref<36x192xf32, #tpu.memory_space<vmem>>, %arg8: memref<36x256xf32, #tpu.memory_space<vmem>>) attributes {dimension_semantics = [#tpu.dimension_semantics<parallel>], iteration_bounds = array<i64: 1>, scalar_prefetch = 0 : i64, scratch_operands = 2 : i64, tpu.core_type = #tpu.core_type<tc>, window_params = [{transform_indices = @transform_0, window_bounds = array<i64: 2, 16, 64>}, {pipeline_mode = #tpu.pipeline_mode<synchronous>, transform_indices = @transform_1, window_bounds = array<i64: 192, 256>}, {pipeline_mode = #tpu.pipeline_mode<synchronous>, transform_indices = @transform_2, window_bounds = array<i64: 1, 256>}, {pipeline_mode = #tpu.pipeline_mode<synchronous>, transform_indices = @transform_3, window_bounds = array<i64: 3, 256, 256>}, {pipeline_mode = #tpu.pipeline_mode<synchronous>, transform_indices = @transform_4, window_bounds = array<i64: 1, 256>}, {transform_indices = @transform_5, window_bounds = array<i64: 2, 16, 256>}]} {
    %cst = arith.constant 0.000000e+00 : f32
    %0 = vector.broadcast %cst : f32 to vector<36x192xf32>
    %c0 = arith.constant 0 : index
    %c0_0 = arith.constant 0 : index
    %1 = vector.load %arg7[%c0, %c0_0] : memref<36x192xf32, #tpu.memory_space<vmem>>, vector<36x192xf32>
    tpu.vector_store %arg7[%c0, %c0_0], %0 {strides = array<i32>} : memref<36x192xf32, #tpu.memory_space<vmem>>, vector<36x192xf32>,
    %c0_1 = arith.constant 0 : index
    %c0_2 = arith.constant 0 : index
    %c0_3 = arith.constant 0 : index
    %2 = vector.load %arg1[%c0_1, %c0_2, %c0_3] : memref<2x16x64xf32, #tpu.memory_space<vmem>>, vector<1x16x64xf32>
    %3 = vector.shape_cast %2 : vector<1x16x64xf32> to vector<16x64xf32>
    %c1 = arith.constant 1 : index
    %c0_4 = arith.constant 0 : index
    %4 = vector.load %arg7[%c1, %c0_4] : memref<36x192xf32, #tpu.memory_space<vmem>>, vector<16x64xf32>
    tpu.vector_store %arg7[%c1, %c0_4], %3 {strides = array<i32>} : memref<36x192xf32, #tpu.memory_space<vmem>>, vector<16x64xf32>,
    %c1_5 = arith.constant 1 : index
    %c0_6 = arith.constant 0 : index
    %c0_7 = arith.constant 0 : index
    %5 = vector.load %arg1[%c1_5, %c0_6, %c0_7] : memref<2x16x64xf32, #tpu.memory_space<vmem>>, vector<1x16x64xf32>
    %6 = vector.shape_cast %5 : vector<1x16x64xf32> to vector<16x64xf32>
    %c19 = arith.constant 19 : index
    %c0_8 = arith.constant 0 : index
    %7 = vector.load %arg7[%c19, %c0_8] : memref<36x192xf32, #tpu.memory_space<vmem>>, vector<16x64xf32>
    tpu.vector_store %arg7[%c19, %c0_8], %6 {strides = array<i32>} : memref<36x192xf32, #tpu.memory_space<vmem>>, vector<16x64xf32>,
    %c1_9 = arith.constant 1 : index
    %c0_10 = arith.constant 0 : index
    %8 = vector.load %arg7[%c1_9, %c0_10] : memref<36x192xf32, #tpu.memory_space<vmem>>, vector<35x64xf32>
    %c0_11 = arith.constant 0 : index
    %c64 = arith.constant 64 : index
    %9 = vector.load %arg7[%c0_11, %c64] : memref<36x192xf32, #tpu.memory_space<vmem>>, vector<35x64xf32>
    tpu.vector_store %arg7[%c0_11, %c64], %8 {strides = array<i32>} : memref<36x192xf32, #tpu.memory_space<vmem>>, vector<35x64xf32>,
    %c2 = arith.constant 2 : index
    %c0_12 = arith.constant 0 : index
    %10 = vector.load %arg7[%c2, %c0_12] : memref<36x192xf32, #tpu.memory_space<vmem>>, vector<34x64xf32>
    %c0_13 = arith.constant 0 : index
    %c128 = arith.constant 128 : index
    %11 = vector.load %arg7[%c0_13, %c128] : memref<36x192xf32, #tpu.memory_space<vmem>>, vector<34x64xf32>
    tpu.vector_store %arg7[%c0_13, %c128], %10 {strides = array<i32>} : memref<36x192xf32, #tpu.memory_space<vmem>>, vector<34x64xf32>,
    %c0_14 = arith.constant 0 : index
    %c0_15 = arith.constant 0 : index
    %12 = vector.load %arg7[%c0_14, %c0_15] : memref<36x192xf32, #tpu.memory_space<vmem>>, vector<36x192xf32>
    %13 = arith.truncf %12 : vector<36x192xf32> to vector<36x192xbf16>
    %c0_16 = arith.constant 0 : index
    %c0_17 = arith.constant 0 : index
    %14 = vector.load %arg2[%c0_16, %c0_17] : memref<192x256xbf16, #tpu.memory_space<vmem>>, vector<192x256xbf16>
    %cst_18 = arith.constant dense<0.000000e+00> : vector<36x256xf32>
    %15 = tpu.matmul %13, %14, %cst_18 {dimension_numbers = #tpu.dot_dimension_numbers<[1], [0], [0], [1], [0, 0, 1, 1], [], []>} : vector<36x192xbf16>, vector<192x256xbf16>, vector<36x256xf32> -> vector<36x256xf32>
    %c0_19 = arith.constant 0 : index
    %c0_20 = arith.constant 0 : index
    %16 = vector.load %arg3[%c0_19, %c0_20] : memref<1x256xf32, #tpu.memory_space<vmem>>, vector<1x256xf32>
    %17 = vector.broadcast %16 : vector<1x256xf32> to vector<36x256xf32>
    %18 = arith.addf %15, %17 : vector<36x256xf32>
    %cst_21 = arith.constant 0.000000e+00 : f32
    %19 = vector.broadcast %cst_21 : f32 to vector<36x256xf32>
    %20 = arith.maximumf %18, %19 : vector<36x256xf32>
    %21 = vector.extract_strided_slice %20 {offsets = [0, 0], sizes = [35, 256], strides = [1, 1]} : vector<36x256xf32> to vector<35x256xf32>
    %c1_22 = arith.constant 1 : index
    %c0_23 = arith.constant 0 : index
    %22 = vector.load %arg8[%c1_22, %c0_23] : memref<36x256xf32, #tpu.memory_space<vmem>>, vector<35x256xf32>
    tpu.vector_store %arg8[%c1_22, %c0_23], %21 {strides = array<i32>} : memref<36x256xf32, #tpu.memory_space<vmem>>, vector<35x256xf32>,
    %cst_24 = arith.constant 0.000000e+00 : f32
    %23 = vector.broadcast %cst_24 : f32 to vector<1x256xf32>
    %c0_25 = arith.constant 0 : index
    %c0_26 = arith.constant 0 : index
    %24 = vector.load %arg8[%c0_25, %c0_26] : memref<36x256xf32, #tpu.memory_space<vmem>>, vector<1x256xf32>
    tpu.vector_store %arg8[%c0_25, %c0_26], %23 {strides = array<i32>} : memref<36x256xf32, #tpu.memory_space<vmem>>, vector<1x256xf32>,
    %c17 = arith.constant 17 : index
    %c0_27 = arith.constant 0 : index
    %25 = vector.load %arg8[%c17, %c0_27] : memref<36x256xf32, #tpu.memory_space<vmem>>, vector<1x256xf32>
    tpu.vector_store %arg8[%c17, %c0_27], %23 {strides = array<i32>} : memref<36x256xf32, #tpu.memory_space<vmem>>, vector<1x256xf32>,
    %c18 = arith.constant 18 : index
    %c0_28 = arith.constant 0 : index
    %26 = vector.load %arg8[%c18, %c0_28] : memref<36x256xf32, #tpu.memory_space<vmem>>, vector<1x256xf32>
    tpu.vector_store %arg8[%c18, %c0_28], %23 {strides = array<i32>} : memref<36x256xf32, #tpu.memory_space<vmem>>, vector<1x256xf32>,
    %c35 = arith.constant 35 : index
    %c0_29 = arith.constant 0 : index
    %27 = vector.load %arg8[%c35, %c0_29] : memref<36x256xf32, #tpu.memory_space<vmem>>, vector<1x256xf32>
    tpu.vector_store %arg8[%c35, %c0_29], %23 {strides = array<i32>} : memref<36x256xf32, #tpu.memory_space<vmem>>, vector<1x256xf32>,
    %c0_30 = arith.constant 0 : index
    %c0_31 = arith.constant 0 : index
    %28 = vector.load %arg8[%c0_30, %c0_31] : memref<36x256xf32, #tpu.memory_space<vmem>>, vector<34x256xf32>
    %29 = arith.truncf %28 : vector<34x256xf32> to vector<34x256xbf16>
    %c0_32 = arith.constant 0 : index
    %c0_33 = arith.constant 0 : index
    %c0_34 = arith.constant 0 : index
    %30 = vector.load %arg4[%c0_32, %c0_33, %c0_34] : memref<3x256x256xbf16, #tpu.memory_space<vmem>>, vector<1x256x256xbf16>
    %31 = vector.shape_cast %30 : vector<1x256x256xbf16> to vector<256x256xbf16>
    %cst_35 = arith.constant dense<0.000000e+00> : vector<34x256xf32>
    %32 = tpu.matmul %29, %31, %cst_35 {dimension_numbers = #tpu.dot_dimension_numbers<[1], [0], [0], [1], [0, 0, 1, 1], [], []>} : vector<34x256xbf16>, vector<256x256xbf16>, vector<34x256xf32> -> vector<34x256xf32>
    %c1_36 = arith.constant 1 : index
    %c0_37 = arith.constant 0 : index
    %33 = vector.load %arg8[%c1_36, %c0_37] : memref<36x256xf32, #tpu.memory_space<vmem>>, vector<34x256xf32>
    %34 = arith.truncf %33 : vector<34x256xf32> to vector<34x256xbf16>
    %c1_38 = arith.constant 1 : index
    %c0_39 = arith.constant 0 : index
    %c0_40 = arith.constant 0 : index
    %35 = vector.load %arg4[%c1_38, %c0_39, %c0_40] : memref<3x256x256xbf16, #tpu.memory_space<vmem>>, vector<1x256x256xbf16>
    %36 = vector.shape_cast %35 : vector<1x256x256xbf16> to vector<256x256xbf16>
    %cst_41 = arith.constant dense<0.000000e+00> : vector<34x256xf32>
    %37 = tpu.matmul %34, %36, %cst_41 {dimension_numbers = #tpu.dot_dimension_numbers<[1], [0], [0], [1], [0, 0, 1, 1], [], []>} : vector<34x256xbf16>, vector<256x256xbf16>, vector<34x256xf32> -> vector<34x256xf32>
    %38 = arith.addf %32, %37 : vector<34x256xf32>
    %c2_42 = arith.constant 2 : index
    %c0_43 = arith.constant 0 : index
    %39 = vector.load %arg8[%c2_42, %c0_43] : memref<36x256xf32, #tpu.memory_space<vmem>>, vector<34x256xf32>
    %40 = arith.truncf %39 : vector<34x256xf32> to vector<34x256xbf16>
    %c2_44 = arith.constant 2 : index
    %c0_45 = arith.constant 0 : index
    %c0_46 = arith.constant 0 : index
    %41 = vector.load %arg4[%c2_44, %c0_45, %c0_46] : memref<3x256x256xbf16, #tpu.memory_space<vmem>>, vector<1x256x256xbf16>
    %42 = vector.shape_cast %41 : vector<1x256x256xbf16> to vector<256x256xbf16>
    %cst_47 = arith.constant dense<0.000000e+00> : vector<34x256xf32>
    %43 = tpu.matmul %40, %42, %cst_47 {dimension_numbers = #tpu.dot_dimension_numbers<[1], [0], [0], [1], [0, 0, 1, 1], [], []>} : vector<34x256xbf16>, vector<256x256xbf16>, vector<34x256xf32> -> vector<34x256xf32>
    %44 = arith.addf %38, %43 : vector<34x256xf32>
    %c0_48 = arith.constant 0 : index
    %c0_49 = arith.constant 0 : index
    %45 = vector.load %arg5[%c0_48, %c0_49] : memref<1x256xf32, #tpu.memory_space<vmem>>, vector<1x256xf32>
    %46 = vector.broadcast %45 : vector<1x256xf32> to vector<34x256xf32>
    %47 = arith.addf %44, %46 : vector<34x256xf32>
    %cst_50 = arith.constant 0.000000e+00 : f32
    %48 = vector.broadcast %cst_50 : f32 to vector<34x256xf32>
    %49 = arith.maximumf %47, %48 : vector<34x256xf32>
    %50 = vector.extract_strided_slice %49 {offsets = [0, 0], sizes = [16, 256], strides = [1, 1]} : vector<34x256xf32> to vector<16x256xf32>
    %c0_51 = arith.constant 0 : index
    %c0_52 = arith.constant 0 : index
    %c0_53 = arith.constant 0 : index
    %51 = vector.load %arg6[%c0_51, %c0_52, %c0_53] : memref<2x16x256xf32, #tpu.memory_space<vmem>>, vector<1x16x256xf32>
    %52 = vector.shape_cast %51 : vector<1x16x256xf32> to vector<16x256xf32>
    %53 = vector.shape_cast %50 : vector<16x256xf32> to vector<1x16x256xf32>
    tpu.vector_store %arg6[%c0_51, %c0_52, %c0_53], %53 {strides = array<i32>} : memref<2x16x256xf32, #tpu.memory_space<vmem>>, vector<1x16x256xf32>,
    %54 = vector.extract_strided_slice %49 {offsets = [18, 0], sizes = [16, 256], strides = [1, 1]} : vector<34x256xf32> to vector<16x256xf32>
    %c1_54 = arith.constant 1 : index
    %c0_55 = arith.constant 0 : index
    %c0_56 = arith.constant 0 : index
    %55 = vector.load %arg6[%c1_54, %c0_55, %c0_56] : memref<2x16x256xf32, #tpu.memory_space<vmem>>, vector<1x16x256xf32>
    %56 = vector.shape_cast %55 : vector<1x16x256xf32> to vector<16x256xf32>
    %57 = vector.shape_cast %54 : vector<16x256xf32> to vector<1x16x256xf32>
    tpu.vector_store %arg6[%c1_54, %c0_55, %c0_56], %57 {strides = array<i32>} : memref<2x16x256xf32, #tpu.memory_space<vmem>>, vector<1x16x256xf32>,
    return
  }
  func.func @transform_0(%arg0: i32) -> (i32, i32, i32) {
    %c0_i32 = arith.constant 0 : i32
    %c0_i32_0 = arith.constant 0 : i32
    %c0_i32_1 = arith.constant 0 : i32
    return %arg0, %c0_i32, %c0_i32_0 : i32, i32, i32
  }
  func.func @transform_1(%arg0: i32) -> (i32, i32) {
    %c0_i32 = arith.constant 0 : i32
    %c0_i32_0 = arith.constant 0 : i32
    %c0_i32_1 = arith.constant 0 : i32
    return %c0_i32, %c0_i32_0 : i32, i32
  }
  func.func @transform_2(%arg0: i32) -> (i32, i32) {
    %c0_i32 = arith.constant 0 : i32
    %c0_i32_0 = arith.constant 0 : i32
    %c0_i32_1 = arith.constant 0 : i32
    return %c0_i32, %c0_i32_0 : i32, i32
  }
  func.func @transform_3(%arg0: i32) -> (i32, i32, i32) {
    %c0_i32 = arith.constant 0 : i32
    %c0_i32_0 = arith.constant 0 : i32
    %c0_i32_1 = arith.constant 0 : i32
    %c0_i32_2 = arith.constant 0 : i32
    return %c0_i32, %c0_i32_0, %c0_i32_1 : i32, i32, i32
  }
  func.func @transform_4(%arg0: i32) -> (i32, i32) {
    %c0_i32 = arith.constant 0 : i32
    %c0_i32_0 = arith.constant 0 : i32
    %c0_i32_1 = arith.constant 0 : i32
    return %c0_i32, %c0_i32_0 : i32, i32
  }
  func.func @transform_5(%arg0: i32) -> (i32, i32, i32) {
    %c0_i32 = arith.constant 0 : i32
    %c0_i32_0 = arith.constant 0 : i32
    %c0_i32_1 = arith.constant 0 : i32
    return %arg0, %c0_i32, %c0_i32_0 : i32, i32, i32
  }
}

</mosaic_0001>

<llo_original>
// kernel: progressive_nn_forward.1
$region0: #{progressive_nn_forward.1}
  #allocation0 [shape = 'u32[]', space=smem, size = 0x4, offset = 0x4, fixed_abs, tag = 'smem constant byte address 0x4 - core index']
  #allocation1 [shape = 'u32[144,128]{1,0:T(1,128)}', space=vmem, size = 0x12000, scoped, tag = 'internal scratch']
  #allocation2 [shape = 'f32[36,192]{1,0:T(8,128)}', space=vmem, size = 0xa000, scoped, tag = 'scratch operand']
  #allocation3 [shape = 'f32[36,256]{1,0:T(8,128)}', space=vmem, size = 0xa000, scoped, tag = 'scratch operand']
  %s0 = inlined_call_operand.vmem [shape: f32[2,16,64], index: 0, kind: input, shape index: {}]
  %s1 = inlined_call_operand.vmem [shape: bf16[192,256], index: 1, kind: input, shape index: {}]
  %s2 = inlined_call_operand.vmem [shape: f32[1,256], index: 2, kind: input, shape index: {}]
  %s3 = inlined_call_operand.hbm [shape: bf16[3,256,256], index: 3, kind: input, shape index: {}]
  %s4 = inlined_call_operand.vmem [shape: f32[1,256], index: 4, kind: input, shape index: {}]
  %s5 = inlined_call_operand.vmem [shape: f32[2,16,256], index: 5, kind: output, shape index: {}]
  %s6 = sld [smem:[#allocation0]]
  $region34: #{progressive_nn_forward.1} parent=0
    _
  %s8 = ssub.s32 1, %s6
  %s9 = scalar_select 0, %s8, %s6
  $region1: #{progressive_nn_forward.1} parent=0
    #allocation4 [shape = 'u8[393216]{0}', space=vmem, size = 0x60000, scoped, tag = 'input window, operand 3, single buffered']
    #allocation5 [shape = 's32[1]{0}', space=sflag, size = 0x4, scoped, tag = 'scoped memory for progressive_nn_forward.1']
    %10 = vsyncpa [#allocation5], 0
    // Predicated region
    $region2: #{progressive_nn_forward.1} parent=1 // pred_check
      _
    $region3: #{progressive_nn_forward.1} parent=1 // pred_check_branch
      %12 = sbr.rel (0) target = $region5
    $region4: #{progressive_nn_forward.1} parent=1 // pred_region
      _
    $region5: #{progressive_nn_forward.1} parent=1 // pred_fallthru
      _
    // Predicated region
    $region6: #{progressive_nn_forward.1} parent=1 // pred_check
      _
    $region7: #{progressive_nn_forward.1} parent=1 // pred_check_branch
      %14 = sbr.rel (0) target = $region9
    $region8: #{progressive_nn_forward.1} parent=1 // pred_region
      _
    $region9: #{progressive_nn_forward.1} parent=1 // pred_fallthru
      _
    // Predicated region
    $region10: #{progressive_nn_forward.1} parent=1 // pred_check
      _
    $region11: #{progressive_nn_forward.1} parent=1 // pred_check_branch
      %16 = sbr.rel (0) target = $region13
    $region12: #{progressive_nn_forward.1} parent=1 // pred_region
      _
    $region13: #{progressive_nn_forward.1} parent=1 // pred_fallthru
      _
    // Predicated region
    $region14: #{progressive_nn_forward.1} parent=1 // pred_check
      _
    $region15: #{progressive_nn_forward.1} parent=1 // pred_check_branch
      %18 = sbr.rel (0) target = $region17
    $region16: #{progressive_nn_forward.1} parent=1 // pred_region
      %s20 = ssub.s32 12288, 12288
      %21 = vsyncadd [#allocation5], %s20
      %s22 = sshll.u32 [#allocation4], 4
      %s23 = int_to_ptr.vmem [resolvable:$true] %s22
      %28 = dma.hbm_to_vmem [thread:$0]  %s3, 12288, %s23, [#allocation5], 128, 128, 8
    $region17: #{progressive_nn_forward.1} parent=1 // pred_fallthru
      _
    // Predicated region
    $region18: #{progressive_nn_forward.1} parent=1 // pred_check
      _
    $region19: #{progressive_nn_forward.1} parent=1 // pred_check_branch
      %30 = sbr.rel (0) target = $region21
    $region20: #{progressive_nn_forward.1} parent=1 // pred_region
      _
    $region21: #{progressive_nn_forward.1} parent=1 // pred_fallthru
      _
    // Predicated region
    $region22: #{progressive_nn_forward.1} parent=1 // pred_check
      _
    $region23: #{progressive_nn_forward.1} parent=1 // pred_check_branch
      %32 = sbr.rel (0) target = $region25
    $region24: #{progressive_nn_forward.1} parent=1 // pred_region
      %33 = dma.done [#allocation5], 12288
    $region25: #{progressive_nn_forward.1} parent=1 // pred_fallthru
      _
    %35 = vst [vmem:[#allocation2] sm:$0xff] 0.0
    %vm36 = vcmask 523264
    %37 = vst.msk [vmem:[#allocation2 + $0x8] sm:$0xff] %vm36, 0.0
    %38 = vst [vmem:[#allocation2 + $0x10] sm:$0xff] 0.0
    %39 = vst.msk [vmem:[#allocation2 + $0x18] sm:$0xff] %vm36, 0.0
    %40 = vst [vmem:[#allocation2 + $0x20] sm:$0xff] 0.0
    %41 = vst.msk [vmem:[#allocation2 + $0x28] sm:$0xff] %vm36, 0.0
    %42 = vst [vmem:[#allocation2 + $0x30] sm:$0xff] 0.0
    %43 = vst.msk [vmem:[#allocation2 + $0x38] sm:$0xff] %vm36, 0.0
    %44 = vst [vmem:[#allocation2 + $0x40] sm:$0xf] 0.0
    %vm45 = vcmask 519168
    %46 = vst.msk [vmem:[#allocation2 + $0x48] sm:$0xf] %vm45, 0.0
    %v47 = vld [vmem:[%s0] sm:$0xff]
    %v48 = vld [vmem:[%s0 + $0x8] sm:$0xff]
    %vm51 = vcmask 1040384
    %v52 = vrot.slane %v47, 7
    %v53 = vrot.slane %v48, 7
    %v54 = vsel %vm51, %v52, %v53
    %vm58 = vcmask 523265
    %59 = vst.msk [vmem:[#allocation2] sm:$0xfe] %vm58, %v52
    %60 = vst.msk [vmem:[#allocation2 + $0x10] sm:$0xff] %vm36, %v54
    %vm61 = vcmask 516096
    %62 = vst.msk [vmem:[#allocation2 + $0x20] sm:$0x1] %vm61, %v53
    %s63 = scalar_lea.vmem %s0, 16
    %v64 = vld [vmem:[%s63] sm:$0xff]
    %v65 = vld [vmem:[%s63 + $0x8] sm:$0xff]
    %vm68 = vcmask 1042432
    %v69 = vrot.slane %v64, 5
    %v70 = vrot.slane %v65, 5
    %v71 = vsel %vm68, %v69, %v70
    %vm75 = vcmask 523267
    %76 = vst.msk [vmem:[#allocation2 + $0x20] sm:$0xf8] %vm75, %v69
    %77 = vst.msk [vmem:[#allocation2 + $0x30] sm:$0xff] %vm36, %v71
    %vm78 = vcmask 518144
    %79 = vst.msk [vmem:[#allocation2 + $0x40] sm:$0x7] %vm78, %v70
    %v80 = vld [vmem:[#allocation2] sm:$0xfe]
    %v81 = vld [vmem:[#allocation2 + $0x10] sm:$0xff]
    %v82 = vld [vmem:[#allocation2 + $0x20] sm:$0xff]
    %v83 = vld [vmem:[#allocation2 + $0x30] sm:$0xff]
    %v84 = vld [vmem:[#allocation2 + $0x40] sm:$0xf]
    %vm90 = vcmask 1046528
    %v91 = vrot.slane %v80, 1
    %v92 = vrot.slane %v81, 1
    %v93 = vsel %vm90, %v91, %v92
    %v94 = vrot.slane %v82, 1
    %v95 = vsel %vm90, %v92, %v94
    %v96 = vrot.slane %v83, 1
    %v97 = vsel %vm90, %v94, %v96
    %v98 = vrot.slane %v84, 1
    %v99 = vsel %vm90, %v96, %v98
    %100 = vrot.lane.b32.xlu0 %v93, 64
    %v101 = vpop.permute.xlu0 %100
    %102 = vrot.lane.b32.xlu0 %v95, 64
    %v103 = vpop.permute.xlu0 %102
    %104 = vrot.lane.b32.xlu0 %v97, 64
    %v105 = vpop.permute.xlu0 %104
    %106 = vrot.lane.b32.xlu0 %v99, 64
    %v107 = vpop.permute.xlu0 %106
    %108 = vrot.lane.b32.xlu0 %v98, 64
    %v109 = vpop.permute.xlu0 %108
    %vm115 = vcmask 1048064
    %116 = vst.msk [vmem:[#allocation2] sm:$0xff] %vm115, %v101
    %117 = vst.msk [vmem:[#allocation2 + $0x10] sm:$0xff] %vm115, %v103
    %118 = vst.msk [vmem:[#allocation2 + $0x20] sm:$0xff] %vm115, %v105
    %119 = vst.msk [vmem:[#allocation2 + $0x30] sm:$0xff] %vm115, %v107
    %vm120 = vcmask 1042944
    %121 = vst.msk [vmem:[#allocation2 + $0x40] sm:$0x7] %vm120, %v109
    %v122 = vld [vmem:[#allocation2] sm:$0xfc]
    %v123 = vld [vmem:[#allocation2 + $0x10] sm:$0xff]
    %v124 = vld [vmem:[#allocation2 + $0x20] sm:$0xff]
    %v125 = vld [vmem:[#allocation2 + $0x30] sm:$0xff]
    %v126 = vld [vmem:[#allocation2 + $0x40] sm:$0xf]
    %vm132 = vcmask 1045504
    %v133 = vrot.slane %v122, 2
    %v134 = vrot.slane %v123, 2
    %v135 = vsel %vm132, %v133, %v134
    %v136 = vrot.slane %v124, 2
    %v137 = vsel %vm132, %v134, %v136
    %v138 = vrot.slane %v125, 2
    %v139 = vsel %vm132, %v136, %v138
    %v140 = vrot.slane %v126, 2
    %v141 = vsel %vm132, %v138, %v140
    %147 = vst.msk [vmem:[#allocation2 + $0x8] sm:$0xff] %vm36, %v135
    %148 = vst.msk [vmem:[#allocation2 + $0x18] sm:$0xff] %vm36, %v137
    %149 = vst.msk [vmem:[#allocation2 + $0x28] sm:$0xff] %vm36, %v139
    %150 = vst.msk [vmem:[#allocation2 + $0x38] sm:$0xff] %vm36, %v141
    %vm151 = vcmask 517120
    %152 = vst.msk [vmem:[#allocation2 + $0x48] sm:$0x3] %vm151, %v140
    %v153 = vld [vmem:[#allocation2] sm:$0xff]
    %v154 = vld [vmem:[#allocation2 + $0x8] sm:$0xff]
    %v155 = vld [vmem:[#allocation2 + $0x10] sm:$0xff]
    %v156 = vld [vmem:[#allocation2 + $0x18] sm:$0xff]
    %v157 = vld [vmem:[#allocation2 + $0x20] sm:$0xff]
    %v158 = vld [vmem:[#allocation2 + $0x28] sm:$0xff]
    %v159 = vld [vmem:[#allocation2 + $0x30] sm:$0xff]
    %v160 = vld [vmem:[#allocation2 + $0x38] sm:$0xff]
    %v161 = vld [vmem:[#allocation2 + $0x40] sm:$0xf]
    %v162 = vld [vmem:[#allocation2 + $0x48] sm:$0xf]
    %v163 = vpack.c.bf16 %v155, %v153
    %v164 = vpack.c.bf16 %v156, %v154
    %v165 = vpack.c.bf16 %v159, %v157
    %v166 = vpack.c.bf16 %v160, %v158
    %v167 = vpack.c.bf16 %v161, %v161
    %v168 = vpack.c.bf16 %v162, %v162
    %v169 = vld [vmem:[%s1] sm:$0xff]
    %v170 = vld [vmem:[%s1 + $0x8] sm:$0xff]
    %v171 = vld [vmem:[%s1 + $0x10] sm:$0xff]
    %v172 = vld [vmem:[%s1 + $0x18] sm:$0xff]
    %v173 = vld [vmem:[%s1 + $0x20] sm:$0xff]
    %v174 = vld [vmem:[%s1 + $0x28] sm:$0xff]
    %v175 = vld [vmem:[%s1 + $0x30] sm:$0xff]
    %v176 = vld [vmem:[%s1 + $0x38] sm:$0xff]
    %v177 = vld [vmem:[%s1 + $0x40] sm:$0xff]
    %v178 = vld [vmem:[%s1 + $0x48] sm:$0xff]
    %v179 = vld [vmem:[%s1 + $0x50] sm:$0xff]
    %v180 = vld [vmem:[%s1 + $0x58] sm:$0xff]
    %v181 = vld [vmem:[%s1 + $0x60] sm:$0xff]
    %v182 = vld [vmem:[%s1 + $0x68] sm:$0xff]
    %v183 = vld [vmem:[%s1 + $0x70] sm:$0xff]
    %v184 = vld [vmem:[%s1 + $0x78] sm:$0xff]
    %v185 = vld [vmem:[%s1 + $0x80] sm:$0xff]
    %v186 = vld [vmem:[%s1 + $0x88] sm:$0xff]
    %v187 = vld [vmem:[%s1 + $0x90] sm:$0xff]
    %v188 = vld [vmem:[%s1 + $0x98] sm:$0xff]
    %v189 = vld [vmem:[%s1 + $0xa0] sm:$0xff]
    %v190 = vld [vmem:[%s1 + $0xa8] sm:$0xff]
    %v191 = vld [vmem:[%s1 + $0xb0] sm:$0xff]
    %v192 = vld [vmem:[%s1 + $0xb8] sm:$0xff]
    %v193 = vld [vmem:[%s2] sm:$0x3]
    %v195 = vlaneseq
    %v196 = vshrl.u32 %v195, 7
    %v197 = vsub.s32 0, %v196
    %v198 = vrot.slane %v193, %v197
    %v199 = vlaneseq
    %v200 = vshrl.u32 %v199, 7
    %v201 = vsub.s32 1, %v200
    %v202 = vrot.slane %v193, %v201
    %v229 = vunpack.c.l.b16 %v169
    %v230 = vunpack.c.h.b16 %v169
    %v231 = vunpack.c.l.b16 %v170
    %v232 = vunpack.c.h.b16 %v170
    %v233 = vunpack.c.l.b16 %v171
    %v234 = vunpack.c.h.b16 %v171
    %v235 = vunpack.c.l.b16 %v172
    %v236 = vunpack.c.h.b16 %v172
    %v237 = vunpack.c.l.b16 %v173
    %v238 = vunpack.c.h.b16 %v173
    %v239 = vunpack.c.l.b16 %v174
    %v240 = vunpack.c.h.b16 %v174
    %v241 = vunpack.c.l.b16 %v175
    %v242 = vunpack.c.h.b16 %v175
    %v243 = vunpack.c.l.b16 %v176
    %v244 = vunpack.c.h.b16 %v176
    %v245 = vunpack.c.l.b16 %v177
    %v246 = vunpack.c.h.b16 %v177
    %v247 = vunpack.c.l.b16 %v178
    %v248 = vunpack.c.h.b16 %v178
    %v249 = vunpack.c.l.b16 %v179
    %v250 = vunpack.c.h.b16 %v179
    %v251 = vunpack.c.l.b16 %v180
    %v252 = vunpack.c.h.b16 %v180
    %v253 = vunpack.c.l.b16 %v181
    %v254 = vunpack.c.h.b16 %v181
    %v255 = vunpack.c.l.b16 %v182
    %v256 = vunpack.c.h.b16 %v182
    %v257 = vunpack.c.l.b16 %v183
    %v258 = vunpack.c.h.b16 %v183
    %v259 = vunpack.c.l.b16 %v184
    %v260 = vunpack.c.h.b16 %v184
    %v261 = vunpack.c.l.b16 %v185
    %v262 = vunpack.c.h.b16 %v185
    %v263 = vunpack.c.l.b16 %v186
    %v264 = vunpack.c.h.b16 %v186
    %v265 = vunpack.c.l.b16 %v187
    %v266 = vunpack.c.h.b16 %v187
    %v267 = vunpack.c.l.b16 %v188
    %v268 = vunpack.c.h.b16 %v188
    %v269 = vunpack.c.l.b16 %v189
    %v270 = vunpack.c.h.b16 %v189
    %v271 = vunpack.c.l.b16 %v190
    %v272 = vunpack.c.h.b16 %v190
    %v273 = vunpack.c.l.b16 %v191
    %v274 = vunpack.c.h.b16 %v191
    %v275 = vunpack.c.l.b16 %v192
    %v276 = vunpack.c.h.b16 %v192
    %v277 = vpack.c.b16 %v231, %v229
    %v278 = vpack.c.b16 %v232, %v230
    %v279 = vpack.c.b16 %v235, %v233
    %v280 = vpack.c.b16 %v236, %v234
    %v281 = vpack.c.b16 %v239, %v237
    %v282 = vpack.c.b16 %v240, %v238
    %v283 = vpack.c.b16 %v243, %v241
    %v284 = vpack.c.b16 %v244, %v242
    %v285 = vpack.c.b16 %v247, %v245
    %v286 = vpack.c.b16 %v248, %v246
    %v287 = vpack.c.b16 %v251, %v249
    %v288 = vpack.c.b16 %v252, %v250
    %v289 = vpack.c.b16 %v255, %v253
    %v290 = vpack.c.b16 %v256, %v254
    %v291 = vpack.c.b16 %v259, %v257
    %v292 = vpack.c.b16 %v260, %v258
    %v293 = vpack.c.b16 %v263, %v261
    %v294 = vpack.c.b16 %v264, %v262
    %v295 = vpack.c.b16 %v267, %v265
    %v296 = vpack.c.b16 %v268, %v266
    %v297 = vpack.c.b16 %v271, %v269
    %v298 = vpack.c.b16 %v272, %v270
    %v299 = vpack.c.b16 %v275, %v273
    %v300 = vpack.c.b16 %v276, %v274
    %v326 = vsel %vm36, %v164, 0
    %v329 = vsel %vm36, %v166, 0
    %v332 = vsel %vm36, %v168, 0
    %334 = vmatprep.subr.bf16.mxu0 %v278
    %335 = vmatpush1.bf16.msra.mxu0 %v277
    %336 = vmatprep.subr.bf16.mxu0 %v280
    %337 = vmatpush1.bf16.msra.mxu0 %v279
    %338 = vmatprep.subr.bf16.mxu0 %v282
    %339 = vmatpush1.bf16.msra.mxu0 %v281
    %340 = vmatprep.subr.bf16.mxu0 %v284
    %341 = vmatpush1.bf16.msra.mxu0 %v283
    %342 = vmatprep.subr.bf16.mxu0 %v286
    %343 = vmatpush1.bf16.msra.mxu0 %v285
    %344 = vmatprep.subr.bf16.mxu0 %v288
    %345 = vmatpush1.bf16.msra.mxu0 %v287
    %346 = vmatprep.subr.bf16.mxu0 %v290
    %347 = vmatpush1.bf16.msra.mxu0 %v289
    %348 = vmatprep.subr.bf16.mxu0 %v292
    %349 = vmatpush1.bf16.msra.mxu0 %v291
    %350 = vmatprep.subr.bf16.mxu0 %v294
    %351 = vmatpush1.bf16.msra.mxu0 %v293
    %352 = vmatprep.subr.bf16.mxu0 %v296
    %353 = vmatpush1.bf16.msra.mxu0 %v295
    %354 = vmatprep.subr.bf16.mxu0 %v298
    %355 = vmatpush1.bf16.msra.mxu0 %v297
    %356 = vmatprep.subr.bf16.mxu0 %v300
    %357 = vmatpush1.bf16.msra.mxu0 %v299
    %358 = vmatprep.subr.bf16.mxu0 0
    %359 = vmatpush1.bf16.msra.mxu0 0
    %360 = vmatprep.subr.bf16.mxu0 0
    %361 = vmatpush1.bf16.msra.mxu0 0
    %362 = vmatprep.subr.bf16.mxu0 0
    %363 = vmatpush1.bf16.msra.mxu0 0
    %364 = vmatprep.subr.bf16.mxu0 0
    %365 = vmatpush1.bf16.msra.mxu0 0
    %366 = vmatprep.mubr.bf16.mxu0 %v326
    %367 = vmatmul.mubr.bf16.gmra.mrb[0].mxu0 %v163
    %v368 = vpop.f32.mrb[0].mxu0
    %v369 = vadd.f32 %v198, %v368
    %v370 = vpop.f32.mrb[0].mxu0
    %v371 = vadd.f32 %v202, %v370
    %v372 = vpop.f32.mrb[0].mxu0
    %v373 = vadd.f32 %v198, %v372
    %v374 = vpop.f32.mrb[0].mxu0
    %v375 = vadd.f32 %v202, %v374
    %376 = vmatprep.mubr.bf16.mxu0 %v329
    %377 = vmatmul.mubr.bf16.gmra.mrb[0].mxu0 %v165
    %v378 = vpop.f32.mrb[0].mxu0
    %v379 = vadd.f32 %v198, %v378
    %v380 = vpop.f32.mrb[0].mxu0
    %v381 = vadd.f32 %v202, %v380
    %v382 = vpop.f32.mrb[0].mxu0
    %v383 = vadd.f32 %v198, %v382
    %v384 = vpop.f32.mrb[0].mxu0
    %v385 = vadd.f32 %v202, %v384
    %386 = vmatprep.mubr.bf16.mxu0 %v332
    %387 = vmatmul.mubr.bf16.gmra.mrb[0].mxu0 %v167
    %v388 = vpop.f32.mrb[0].mxu0
    %v389 = vadd.f32 %v198, %v388
    %v390 = vpop.f32.mrb[0].mxu0
    %v391 = vadd.f32 %v202, %v390
    %v392 = vpop.f32.mrb[0].mxu0
    %v393 = vpop.f32.mrb[0].mxu0
    %394 = vdwg.mxu0
    %v395 = vmax.f32 %v369, 0.0
    %v396 = vmax.f32 %v371, 0.0
    %v397 = vmax.f32 %v373, 0.0
    %v398 = vmax.f32 %v375, 0.0
    %v399 = vmax.f32 %v379, 0.0
    %v400 = vmax.f32 %v381, 0.0
    %v401 = vmax.f32 %v383, 0.0
    %v402 = vmax.f32 %v385, 0.0
    %v403 = vmax.f32 %v389, 0.0
    %v404 = vmax.f32 %v391, 0.0
    %v415 = vrot.slane %v395, 7
    %v416 = vrot.slane %v396, 7
    %v417 = vrot.slane %v397, 7
    %v418 = vsel %vm51, %v415, %v417
    %v419 = vrot.slane %v398, 7
    %v420 = vsel %vm51, %v416, %v419
    %v421 = vrot.slane %v399, 7
    %v422 = vsel %vm51, %v417, %v421
    %v423 = vrot.slane %v400, 7
    %v424 = vsel %vm51, %v419, %v423
    %v425 = vrot.slane %v401, 7
    %v426 = vsel %vm51, %v421, %v425
    %v427 = vrot.slane %v402, 7
    %v428 = vsel %vm51, %v423, %v427
    %v429 = vrot.slane %v403, 7
    %v430 = vsel %vm51, %v425, %v429
    %v431 = vrot.slane %v404, 7
    %v432 = vsel %vm51, %v427, %v431
    %443 = vst [vmem:[#allocation3] sm:$0xfe] %v415
    %444 = vst [vmem:[#allocation3 + $0x8] sm:$0xfe] %v416
    %445 = vst [vmem:[#allocation3 + $0x10] sm:$0xff] %v418
    %446 = vst [vmem:[#allocation3 + $0x18] sm:$0xff] %v420
    %447 = vst [vmem:[#allocation3 + $0x20] sm:$0xff] %v422
    %448 = vst [vmem:[#allocation3 + $0x28] sm:$0xff] %v424
    %449 = vst [vmem:[#allocation3 + $0x30] sm:$0xff] %v426
    %450 = vst [vmem:[#allocation3 + $0x38] sm:$0xff] %v428
    %451 = vst [vmem:[#allocation3 + $0x40] sm:$0xf] %v430
    %452 = vst [vmem:[#allocation3 + $0x48] sm:$0xf] %v432
    %v453 = vlaneseq
    %vm454 = vcmp.ge.s32.totalorder %v453, 0
    %vm455 = vcmp.lt.s32.totalorder %v453, 256
    %vm456 = vmand %vm454, %vm455
    %457 = vst.msk [vmem:[#allocation3] ss:$8 sm:$0x3] %vm456, 0.0
    %458 = vst.msk [vmem:[#allocation3] ss:$8 sm:$0x0] %vm456, 0.0
    %s459 = scalar_lea.vmem [#allocation3], 33
    %460 = vst.msk [vmem:[%s459] ss:$8 sm:$0x3] %vm456, 0.0
    %461 = vst.msk [vmem:[%s459] ss:$8 sm:$0x0] %vm456, 0.0
    %s462 = scalar_lea.vmem [#allocation3], 34
    %463 = vst.msk [vmem:[%s462] ss:$8 sm:$0x3] %vm456, 0.0
    %464 = vst.msk [vmem:[%s462] ss:$8 sm:$0x0] %vm456, 0.0
    %s465 = scalar_lea.vmem [#allocation3], 67
    %466 = vst.msk [vmem:[%s465] ss:$8 sm:$0x3] %vm456, 0.0
    %467 = vst.msk [vmem:[%s465] ss:$8 sm:$0x0] %vm456, 0.0
    %v468 = vld [vmem:[#allocation3] sm:$0xff]
    %v469 = vld [vmem:[#allocation3 + $0x8] sm:$0xff]
    %v470 = vld [vmem:[#allocation3 + $0x10] sm:$0xff]
    %v471 = vld [vmem:[#allocation3 + $0x18] sm:$0xff]
    %v472 = vld [vmem:[#allocation3 + $0x20] sm:$0xff]
    %v473 = vld [vmem:[#allocation3 + $0x28] sm:$0xff]
    %v474 = vld [vmem:[#allocation3 + $0x30] sm:$0xff]
    %v475 = vld [vmem:[#allocation3 + $0x38] sm:$0xff]
    %v476 = vld [vmem:[#allocation3 + $0x40] sm:$0x3]
    %v477 = vld [vmem:[#allocation3 + $0x48] sm:$0x3]
    %v478 = vpack.c.bf16 %v470, %v468
    %v479 = vpack.c.bf16 %v471, %v469
    %v480 = vpack.c.bf16 %v474, %v472
    %v481 = vpack.c.bf16 %v475, %v473
    %v482 = vpack.c.bf16 %v476, %v476
    %v483 = vpack.c.bf16 %v477, %v477
    %v484 = vld [vmem:[#allocation4] sm:$0xff]
    %v485 = vld [vmem:[#allocation4 + $0x8] sm:$0xff]
    %v486 = vld [vmem:[#allocation4 + $0x10] sm:$0xff]
    %v487 = vld [vmem:[#allocation4 + $0x18] sm:$0xff]
    %v488 = vld [vmem:[#allocation4 + $0x20] sm:$0xff]
    %v489 = vld [vmem:[#allocation4 + $0x28] sm:$0xff]
    %v490 = vld [vmem:[#allocation4 + $0x30] sm:$0xff]
    %v491 = vld [vmem:[#allocation4 + $0x38] sm:$0xff]
    %v492 = vld [vmem:[#allocation4 + $0x40] sm:$0xff]
    %v493 = vld [vmem:[#allocation4 + $0x48] sm:$0xff]
    %v494 = vld [vmem:[#allocation4 + $0x50] sm:$0xff]
    %v495 = vld [vmem:[#allocation4 + $0x58] sm:$0xff]
    %v496 = vld [vmem:[#allocation4 + $0x60] sm:$0xff]
    %v497 = vld [vmem:[#allocation4 + $0x68] sm:$0xff]
    %v498 = vld [vmem:[#allocation4 + $0x70] sm:$0xff]
    %v499 = vld [vmem:[#allocation4 + $0x78] sm:$0xff]
    %v500 = vld [vmem:[#allocation4 + $0x80] sm:$0xff]
    %v501 = vld [vmem:[#allocation4 + $0x88] sm:$0xff]
    %v502 = vld [vmem:[#allocation4 + $0x90] sm:$0xff]
    %v503 = vld [vmem:[#allocation4 + $0x98] sm:$0xff]
    %v504 = vld [vmem:[#allocation4 + $0xa0] sm:$0xff]
    %v505 = vld [vmem:[#allocation4 + $0xa8] sm:$0xff]
    %v506 = vld [vmem:[#allocation4 + $0xb0] sm:$0xff]
    %v507 = vld [vmem:[#allocation4 + $0xb8] sm:$0xff]
    %v508 = vld [vmem:[#allocation4 + $0xc0] sm:$0xff]
    %v509 = vld [vmem:[#allocation4 + $0xc8] sm:$0xff]
    %v510 = vld [vmem:[#allocation4 + $0xd0] sm:$0xff]
    %v511 = vld [vmem:[#allocation4 + $0xd8] sm:$0xff]
    %v512 = vld [vmem:[#allocation4 + $0xe0] sm:$0xff]
    %v513 = vld [vmem:[#allocation4 + $0xe8] sm:$0xff]
    %v514 = vld [vmem:[#allocation4 + $0xf0] sm:$0xff]
    %v515 = vld [vmem:[#allocation4 + $0xf8] sm:$0xff]
    %v516 = vld [vmem:[#allocation3] sm:$0xfe]
    %v517 = vld [vmem:[#allocation3 + $0x8] sm:$0xfe]
    %v518 = vld [vmem:[#allocation3 + $0x40] sm:$0x7]
    %v519 = vld [vmem:[#allocation3 + $0x48] sm:$0x7]
    %v520 = vpack.c.bf16 %v470, %v516
    %v521 = vpack.c.bf16 %v471, %v517
    %v522 = vpack.c.bf16 %v518, %v518
    %v523 = vpack.c.bf16 %v519, %v519
    %s524 = scalar_lea.vmem [#allocation4], 256
    %v525 = vld [vmem:[%s524] sm:$0xff]
    %v526 = vld [vmem:[%s524 + $0x8] sm:$0xff]
    %v527 = vld [vmem:[%s524 + $0x10] sm:$0xff]
    %v528 = vld [vmem:[%s524 + $0x18] sm:$0xff]
    %v529 = vld [vmem:[%s524 + $0x20] sm:$0xff]
    %v530 = vld [vmem:[%s524 + $0x28] sm:$0xff]
    %v531 = vld [vmem:[%s524 + $0x30] sm:$0xff]
    %v532 = vld [vmem:[%s524 + $0x38] sm:$0xff]
    %v533 = vld [vmem:[%s524 + $0x40] sm:$0xff]
    %v534 = vld [vmem:[%s524 + $0x48] sm:$0xff]
    %v535 = vld [vmem:[%s524 + $0x50] sm:$0xff]
    %v536 = vld [vmem:[%s524 + $0x58] sm:$0xff]
    %v537 = vld [vmem:[%s524 + $0x60] sm:$0xff]
    %v538 = vld [vmem:[%s524 + $0x68] sm:$0xff]
    %v539 = vld [vmem:[%s524 + $0x70] sm:$0xff]
    %v540 = vld [vmem:[%s524 + $0x78] sm:$0xff]
    %v541 = vld [vmem:[%s524 + $0x80] sm:$0xff]
    %v542 = vld [vmem:[%s524 + $0x88] sm:$0xff]
    %v543 = vld [vmem:[%s524 + $0x90] sm:$0xff]
    %v544 = vld [vmem:[%s524 + $0x98] sm:$0xff]
    %v545 = vld [vmem:[%s524 + $0xa0] sm:$0xff]
    %v546 = vld [vmem:[%s524 + $0xa8] sm:$0xff]
    %v547 = vld [vmem:[%s524 + $0xb0] sm:$0xff]
    %v548 = vld [vmem:[%s524 + $0xb8] sm:$0xff]
    %v549 = vld [vmem:[%s524 + $0xc0] sm:$0xff]
    %v550 = vld [vmem:[%s524 + $0xc8] sm:$0xff]
    %v551 = vld [vmem:[%s524 + $0xd0] sm:$0xff]
    %v552 = vld [vmem:[%s524 + $0xd8] sm:$0xff]
    %v553 = vld [vmem:[%s524 + $0xe0] sm:$0xff]
    %v554 = vld [vmem:[%s524 + $0xe8] sm:$0xff]
    %v555 = vld [vmem:[%s524 + $0xf0] sm:$0xff]
    %v556 = vld [vmem:[%s524 + $0xf8] sm:$0xff]
    %vm557 = vsmask.f32 7424
    %v559 = vshrl.u32 %v520, 16
    %v561 = vshll.u32 %v520, 16
    %v563 = vrot.slane %v561, 1
    %v564 = vor.u32 %v559, %v563
    %v566 = vshll.u32 %v480, 16
    %v568 = vrot.slane %v566, 1
    %v569 = vsel %vm557, %v564, %v568
    %v571 = vshrl.u32 %v521, 16
    %v573 = vshll.u32 %v521, 16
    %v575 = vrot.slane %v573, 1
    %v576 = vor.u32 %v571, %v575
    %v578 = vshll.u32 %v481, 16
    %v580 = vrot.slane %v578, 1
    %v581 = vsel %vm557, %v576, %v580
    %v582 = vshrl.u32 %v480, 16
    %v584 = vor.u32 %v582, %v568
    %v586 = vshll.u32 %v522, 16
    %v588 = vrot.slane %v586, 1
    %v589 = vsel %vm557, %v584, %v588
    %v590 = vshrl.u32 %v481, 16
    %v592 = vor.u32 %v590, %v580
    %v594 = vshll.u32 %v523, 16
    %v596 = vrot.slane %v594, 1
    %v597 = vsel %vm557, %v592, %v596
    %v598 = vshrl.u32 %v522, 16
    %v600 = vor.u32 %v598, %v588
    %v601 = vshrl.u32 %v523, 16
    %v603 = vor.u32 %v601, %v596
    %v642 = vunpack.c.l.b16 %v525
    %v643 = vunpack.c.h.b16 %v525
    %v644 = vunpack.c.l.b16 %v526
    %v645 = vunpack.c.h.b16 %v526
    %v646 = vunpack.c.l.b16 %v527
    %v647 = vunpack.c.h.b16 %v527
    %v648 = vunpack.c.l.b16 %v528
    %v649 = vunpack.c.h.b16 %v528
    %v650 = vunpack.c.l.b16 %v529
    %v651 = vunpack.c.h.b16 %v529
    %v652 = vunpack.c.l.b16 %v530
    %v653 = vunpack.c.h.b16 %v530
    %v654 = vunpack.c.l.b16 %v531
    %v655 = vunpack.c.h.b16 %v531
    %v656 = vunpack.c.l.b16 %v532
    %v657 = vunpack.c.h.b16 %v532
    %v658 = vunpack.c.l.b16 %v533
    %v659 = vunpack.c.h.b16 %v533
    %v660 = vunpack.c.l.b16 %v534
    %v661 = vunpack.c.h.b16 %v534
    %v662 = vunpack.c.l.b16 %v535
    %v663 = vunpack.c.h.b16 %v535
    %v664 = vunpack.c.l.b16 %v536
    %v665 = vunpack.c.h.b16 %v536
    %v666 = vunpack.c.l.b16 %v537
    %v667 = vunpack.c.h.b16 %v537
    %v668 = vunpack.c.l.b16 %v538
    %v669 = vunpack.c.h.b16 %v538
    %v670 = vunpack.c.l.b16 %v539
    %v671 = vunpack.c.h.b16 %v539
    %v672 = vunpack.c.l.b16 %v540
    %v673 = vunpack.c.h.b16 %v540
    %v674 = vunpack.c.l.b16 %v541
    %v675 = vunpack.c.h.b16 %v541
    %v676 = vunpack.c.l.b16 %v542
    %v677 = vunpack.c.h.b16 %v542
    %v678 = vunpack.c.l.b16 %v543
    %v679 = vunpack.c.h.b16 %v543
    %v680 = vunpack.c.l.b16 %v544
    %v681 = vunpack.c.h.b16 %v544
    %v682 = vunpack.c.l.b16 %v545
    %v683 = vunpack.c.h.b16 %v545
    %v684 = vunpack.c.l.b16 %v546
    %v685 = vunpack.c.h.b16 %v546
    %v686 = vunpack.c.l.b16 %v547
    %v687 = vunpack.c.h.b16 %v547
    %v688 = vunpack.c.l.b16 %v548
    %v689 = vunpack.c.h.b16 %v548
    %v690 = vunpack.c.l.b16 %v549
    %v691 = vunpack.c.h.b16 %v549
    %v692 = vunpack.c.l.b16 %v550
    %v693 = vunpack.c.h.b16 %v550
    %v694 = vunpack.c.l.b16 %v551
    %v695 = vunpack.c.h.b16 %v551
    %v696 = vunpack.c.l.b16 %v552
    %v697 = vunpack.c.h.b16 %v552
    %v698 = vunpack.c.l.b16 %v553
    %v699 = vunpack.c.h.b16 %v553
    %v700 = vunpack.c.l.b16 %v554
    %v701 = vunpack.c.h.b16 %v554
    %v702 = vunpack.c.l.b16 %v555
    %v703 = vunpack.c.h.b16 %v555
    %v704 = vunpack.c.l.b16 %v556
    %v705 = vunpack.c.h.b16 %v556
    %v706 = vpack.c.b16 %v644, %v642
    %v707 = vpack.c.b16 %v645, %v643
    %v708 = vpack.c.b16 %v648, %v646
    %v709 = vpack.c.b16 %v649, %v647
    %v710 = vpack.c.b16 %v652, %v650
    %v711 = vpack.c.b16 %v653, %v651
    %v712 = vpack.c.b16 %v656, %v654
    %v713 = vpack.c.b16 %v657, %v655
    %v714 = vpack.c.b16 %v660, %v658
    %v715 = vpack.c.b16 %v661, %v659
    %v716 = vpack.c.b16 %v664, %v662
    %v717 = vpack.c.b16 %v665, %v663
    %v718 = vpack.c.b16 %v668, %v666
    %v719 = vpack.c.b16 %v669, %v667
    %v720 = vpack.c.b16 %v672, %v670
    %v721 = vpack.c.b16 %v673, %v671
    %v722 = vpack.c.b16 %v676, %v674
    %v723 = vpack.c.b16 %v677, %v675
    %v724 = vpack.c.b16 %v680, %v678
    %v725 = vpack.c.b16 %v681, %v679
    %v726 = vpack.c.b16 %v684, %v682
    %v727 = vpack.c.b16 %v685, %v683
    %v728 = vpack.c.b16 %v688, %v686
    %v729 = vpack.c.b16 %v689, %v687
    %v730 = vpack.c.b16 %v692, %v690
    %v731 = vpack.c.b16 %v693, %v691
    %v732 = vpack.c.b16 %v696, %v694
    %v733 = vpack.c.b16 %v697, %v695
    %v734 = vpack.c.b16 %v700, %v698
    %v735 = vpack.c.b16 %v701, %v699
    %v736 = vpack.c.b16 %v704, %v702
    %v737 = vpack.c.b16 %v705, %v703
    %770 = vmatprep.subr.bf16.mxu0 %v707
    %771 = vmatpush1.bf16.msra.mxu0 %v706
    %772 = vmatprep.subr.bf16.mxu0 %v709
    %773 = vmatpush1.bf16.msra.mxu0 %v708
    %774 = vmatprep.subr.bf16.mxu0 %v711
    %775 = vmatpush1.bf16.msra.mxu0 %v710
    %776 = vmatprep.subr.bf16.mxu0 %v713
    %777 = vmatpush1.bf16.msra.mxu0 %v712
    %778 = vmatprep.subr.bf16.mxu0 %v715
    %779 = vmatpush1.bf16.msra.mxu0 %v714
    %780 = vmatprep.subr.bf16.mxu0 %v717
    %781 = vmatpush1.bf16.msra.mxu0 %v716
    %782 = vmatprep.subr.bf16.mxu0 %v719
    %783 = vmatpush1.bf16.msra.mxu0 %v718
    %784 = vmatprep.subr.bf16.mxu0 %v721
    %785 = vmatpush1.bf16.msra.mxu0 %v720
    %786 = vmatprep.subr.bf16.mxu0 %v723
    %787 = vmatpush1.bf16.msra.mxu0 %v722
    %788 = vmatprep.subr.bf16.mxu0 %v725
    %789 = vmatpush1.bf16.msra.mxu0 %v724
    %790 = vmatprep.subr.bf16.mxu0 %v727
    %791 = vmatpush1.bf16.msra.mxu0 %v726
    %792 = vmatprep.subr.bf16.mxu0 %v729
    %793 = vmatpush1.bf16.msra.mxu0 %v728
    %794 = vmatprep.subr.bf16.mxu0 %v731
    %795 = vmatpush1.bf16.msra.mxu0 %v730
    %796 = vmatprep.subr.bf16.mxu0 %v733
    %797 = vmatpush1.bf16.msra.mxu0 %v732
    %798 = vmatprep.subr.bf16.mxu0 %v735
    %799 = vmatpush1.bf16.msra.mxu0 %v734
    %800 = vmatprep.subr.bf16.mxu0 %v737
    %801 = vmatpush1.bf16.msra.mxu0 %v736
    %802 = vmatprep.mubr.bf16.mxu0 %v581
    %803 = vmatmul.mubr.bf16.gmra.mrb[0].mxu0 %v569
    %v804 = vpop.f32.mrb[0].mxu0
    %v805 = vadd.f32 0.0, %v804
    %v806 = vpop.f32.mrb[0].mxu0
    %v807 = vadd.f32 0.0, %v806
    %v808 = vpop.f32.mrb[0].mxu0
    %v809 = vadd.f32 0.0, %v808
    %v810 = vpop.f32.mrb[0].mxu0
    %v811 = vadd.f32 0.0, %v810
    %812 = vmatprep.mubr.bf16.mxu0 %v597
    %813 = vmatmul.mubr.bf16.gmra.mrb[0].mxu0 %v589
    %v814 = vpop.f32.mrb[0].mxu0
    %v815 = vadd.f32 0.0, %v814
    %v816 = vpop.f32.mrb[0].mxu0
    %v817 = vadd.f32 0.0, %v816
    %v818 = vpop.f32.mrb[0].mxu0
    %v819 = vadd.f32 0.0, %v818
    %v820 = vpop.f32.mrb[0].mxu0
    %v821 = vadd.f32 0.0, %v820
    %822 = vmatprep.mubr.bf16.mxu0 %v603
    %823 = vmatmul.mubr.bf16.gmra.mrb[0].mxu0 %v600
    %v824 = vpop.f32.mrb[0].mxu0
    %v825 = vadd.f32 0.0, %v824
    %v826 = vpop.f32.mrb[0].mxu0
    %v827 = vadd.f32 0.0, %v826
    %v828 = vpop.f32.mrb[0].mxu0
    %v829 = vpop.f32.mrb[0].mxu0
    %830 = vdwg.mxu0
    %v863 = vunpack.c.l.b16 %v484
    %v864 = vunpack.c.h.b16 %v484
    %v865 = vunpack.c.l.b16 %v485
    %v866 = vunpack.c.h.b16 %v485
    %v867 = vunpack.c.l.b16 %v486
    %v868 = vunpack.c.h.b16 %v486
    %v869 = vunpack.c.l.b16 %v487
    %v870 = vunpack.c.h.b16 %v487
    %v871 = vunpack.c.l.b16 %v488
    %v872 = vunpack.c.h.b16 %v488
    %v873 = vunpack.c.l.b16 %v489
    %v874 = vunpack.c.h.b16 %v489
    %v875 = vunpack.c.l.b16 %v490
    %v876 = vunpack.c.h.b16 %v490
    %v877 = vunpack.c.l.b16 %v491
    %v878 = vunpack.c.h.b16 %v491
    %v879 = vunpack.c.l.b16 %v492
    %v880 = vunpack.c.h.b16 %v492
    %v881 = vunpack.c.l.b16 %v493
    %v882 = vunpack.c.h.b16 %v493
    %v883 = vunpack.c.l.b16 %v494
    %v884 = vunpack.c.h.b16 %v494
    %v885 = vunpack.c.l.b16 %v495
    %v886 = vunpack.c.h.b16 %v495
    %v887 = vunpack.c.l.b16 %v496
    %v888 = vunpack.c.h.b16 %v496
    %v889 = vunpack.c.l.b16 %v497
    %v890 = vunpack.c.h.b16 %v497
    %v891 = vunpack.c.l.b16 %v498
    %v892 = vunpack.c.h.b16 %v498
    %v893 = vunpack.c.l.b16 %v499
    %v894 = vunpack.c.h.b16 %v499
    %v895 = vunpack.c.l.b16 %v500
    %v896 = vunpack.c.h.b16 %v500
    %v897 = vunpack.c.l.b16 %v501
    %v898 = vunpack.c.h.b16 %v501
    %v899 = vunpack.c.l.b16 %v502
    %v900 = vunpack.c.h.b16 %v502
    %v901 = vunpack.c.l.b16 %v503
    %v902 = vunpack.c.h.b16 %v503
    %v903 = vunpack.c.l.b16 %v504
    %v904 = vunpack.c.h.b16 %v504
    %v905 = vunpack.c.l.b16 %v505
    %v906 = vunpack.c.h.b16 %v505
    %v907 = vunpack.c.l.b16 %v506
    %v908 = vunpack.c.h.b16 %v506
    %v909 = vunpack.c.l.b16 %v507
    %v910 = vunpack.c.h.b16 %v507
    %v911 = vunpack.c.l.b16 %v508
    %v912 = vunpack.c.h.b16 %v508
    %v913 = vunpack.c.l.b16 %v509
    %v914 = vunpack.c.h.b16 %v509
    %v915 = vunpack.c.l.b16 %v510
    %v916 = vunpack.c.h.b16 %v510
    %v917 = vunpack.c.l.b16 %v511
    %v918 = vunpack.c.h.b16 %v511
    %v919 = vunpack.c.l.b16 %v512
    %v920 = vunpack.c.h.b16 %v512
    %v921 = vunpack.c.l.b16 %v513
    %v922 = vunpack.c.h.b16 %v513
    %v923 = vunpack.c.l.b16 %v514
    %v924 = vunpack.c.h.b16 %v514
    %v925 = vunpack.c.l.b16 %v515
    %v926 = vunpack.c.h.b16 %v515
    %v927 = vpack.c.b16 %v865, %v863
    %v928 = vpack.c.b16 %v866, %v864
    %v929 = vpack.c.b16 %v869, %v867
    %v930 = vpack.c.b16 %v870, %v868
    %v931 = vpack.c.b16 %v873, %v871
    %v932 = vpack.c.b16 %v874, %v872
    %v933 = vpack.c.b16 %v877, %v875
    %v934 = vpack.c.b16 %v878, %v876
    %v935 = vpack.c.b16 %v881, %v879
    %v936 = vpack.c.b16 %v882, %v880
    %v937 = vpack.c.b16 %v885, %v883
    %v938 = vpack.c.b16 %v886, %v884
    %v939 = vpack.c.b16 %v889, %v887
    %v940 = vpack.c.b16 %v890, %v888
    %v941 = vpack.c.b16 %v893, %v891
    %v942 = vpack.c.b16 %v894, %v892
    %v943 = vpack.c.b16 %v897, %v895
    %v944 = vpack.c.b16 %v898, %v896
    %v945 = vpack.c.b16 %v901, %v899
    %v946 = vpack.c.b16 %v902, %v900
    %v947 = vpack.c.b16 %v905, %v903
    %v948 = vpack.c.b16 %v906, %v904
    %v949 = vpack.c.b16 %v909, %v907
    %v950 = vpack.c.b16 %v910, %v908
    %v951 = vpack.c.b16 %v913, %v911
    %v952 = vpack.c.b16 %v914, %v912
    %v953 = vpack.c.b16 %v917, %v915
    %v954 = vpack.c.b16 %v918, %v916
    %v955 = vpack.c.b16 %v921, %v919
    %v956 = vpack.c.b16 %v922, %v920
    %v957 = vpack.c.b16 %v925, %v923
    %v958 = vpack.c.b16 %v926, %v924
    %991 = vmatprep.subr.bf16.mxu0 %v928
    %992 = vmatpush1.bf16.msra.mxu0 %v927
    %993 = vmatprep.subr.bf16.mxu0 %v930
    %994 = vmatpush1.bf16.msra.mxu0 %v929
    %995 = vmatprep.subr.bf16.mxu0 %v932
    %996 = vmatpush1.bf16.msra.mxu0 %v931
    %997 = vmatprep.subr.bf16.mxu0 %v934
    %998 = vmatpush1.bf16.msra.mxu0 %v933
    %999 = vmatprep.subr.bf16.mxu0 %v936
    %1000 = vmatpush1.bf16.msra.mxu0 %v935
    %1001 = vmatprep.subr.bf16.mxu0 %v938
    %1002 = vmatpush1.bf16.msra.mxu0 %v937
    %1003 = vmatprep.subr.bf16.mxu0 %v940
    %1004 = vmatpush1.bf16.msra.mxu0 %v939
    %1005 = vmatprep.subr.bf16.mxu0 %v942
    %1006 = vmatpush1.bf16.msra.mxu0 %v941
    %1007 = vmatprep.subr.bf16.mxu0 %v944
    %1008 = vmatpush1.bf16.msra.mxu0 %v943
    %1009 = vmatprep.subr.bf16.mxu0 %v946
    %1010 = vmatpush1.bf16.msra.mxu0 %v945
    %1011 = vmatprep.subr.bf16.mxu0 %v948
    %1012 = vmatpush1.bf16.msra.mxu0 %v947
    %1013 = vmatprep.subr.bf16.mxu0 %v950
    %1014 = vmatpush1.bf16.msra.mxu0 %v949
    %1015 = vmatprep.subr.bf16.mxu0 %v952
    %1016 = vmatpush1.bf16.msra.mxu0 %v951
    %1017 = vmatprep.subr.bf16.mxu0 %v954
    %1018 = vmatpush1.bf16.msra.mxu0 %v953
    %1019 = vmatprep.subr.bf16.mxu0 %v956
    %1020 = vmatpush1.bf16.msra.mxu0 %v955
    %1021 = vmatprep.subr.bf16.mxu0 %v958
    %1022 = vmatpush1.bf16.msra.mxu0 %v957
    %1023 = vmatprep.mubr.bf16.mxu0 %v479
    %1024 = vmatmul.mubr.bf16.gmra.mrb[0].mxu0 %v478
    %v1025 = vpop.f32.mrb[0].mxu0
    %v1026 = vadd.f32 %v805, %v1025
    %v1027 = vpop.f32.mrb[0].mxu0
    %v1028 = vadd.f32 %v807, %v1027
    %v1029 = vpop.f32.mrb[0].mxu0
    %v1030 = vadd.f32 %v809, %v1029
    %v1031 = vpop.f32.mrb[0].mxu0
    %v1032 = vadd.f32 %v811, %v1031
    %1033 = vmatprep.mubr.bf16.mxu0 %v481
    %1034 = vmatmul.mubr.bf16.gmra.mrb[0].mxu0 %v480
    %v1035 = vpop.f32.mrb[0].mxu0
    %v1036 = vadd.f32 %v815, %v1035
    %v1037 = vpop.f32.mrb[0].mxu0
    %v1038 = vadd.f32 %v817, %v1037
    %v1039 = vpop.f32.mrb[0].mxu0
    %v1040 = vadd.f32 %v819, %v1039
    %v1041 = vpop.f32.mrb[0].mxu0
    %v1042 = vadd.f32 %v821, %v1041
    %1043 = vmatprep.mubr.bf16.mxu0 %v483
    %1044 = vmatmul.mubr.bf16.gmra.mrb[0].mxu0 %v482
    %v1045 = vpop.f32.mrb[0].mxu0
    %v1046 = vadd.f32 %v825, %v1045
    %v1047 = vpop.f32.mrb[0].mxu0
    %v1048 = vadd.f32 %v827, %v1047
    %v1049 = vpop.f32.mrb[0].mxu0
    %v1050 = vpop.f32.mrb[0].mxu0
    %1051 = vdwg.mxu0
    %v1052 = vld [vmem:[#allocation3] sm:$0xfc]
    %v1053 = vld [vmem:[#allocation3 + $0x8] sm:$0xfc]
    %v1054 = vld [vmem:[#allocation3 + $0x40] sm:$0xf]
    %v1055 = vld [vmem:[#allocation3 + $0x48] sm:$0xf]
    %v1056 = vpack.c.bf16 %v470, %v1052
    %v1057 = vpack.c.bf16 %v471, %v1053
    %v1058 = vpack.c.bf16 %v1054, %v1054
    %v1059 = vpack.c.bf16 %v1055, %v1055
    %s1060 = scalar_lea.vmem [#allocation4], 512
    %v1061 = vld [vmem:[%s1060] sm:$0xff]
    %v1062 = vld [vmem:[%s1060 + $0x8] sm:$0xff]
    %v1063 = vld [vmem:[%s1060 + $0x10] sm:$0xff]
    %v1064 = vld [vmem:[%s1060 + $0x18] sm:$0xff]
    %v1065 = vld [vmem:[%s1060 + $0x20] sm:$0xff]
    %v1066 = vld [vmem:[%s1060 + $0x28] sm:$0xff]
    %v1067 = vld [vmem:[%s1060 + $0x30] sm:$0xff]
    %v1068 = vld [vmem:[%s1060 + $0x38] sm:$0xff]
    %v1069 = vld [vmem:[%s1060 + $0x40] sm:$0xff]
    %v1070 = vld [vmem:[%s1060 + $0x48] sm:$0xff]
    %v1071 = vld [vmem:[%s1060 + $0x50] sm:$0xff]
    %v1072 = vld [vmem:[%s1060 + $0x58] sm:$0xff]
    %v1073 = vld [vmem:[%s1060 + $0x60] sm:$0xff]
    %v1074 = vld [vmem:[%s1060 + $0x68] sm:$0xff]
    %v1075 = vld [vmem:[%s1060 + $0x70] sm:$0xff]
    %v1076 = vld [vmem:[%s1060 + $0x78] sm:$0xff]
    %v1077 = vld [vmem:[%s1060 + $0x80] sm:$0xff]
    %v1078 = vld [vmem:[%s1060 + $0x88] sm:$0xff]
    %v1079 = vld [vmem:[%s1060 + $0x90] sm:$0xff]
    %v1080 = vld [vmem:[%s1060 + $0x98] sm:$0xff]
    %v1081 = vld [vmem:[%s1060 + $0xa0] sm:$0xff]
    %v1082 = vld [vmem:[%s1060 + $0xa8] sm:$0xff]
    %v1083 = vld [vmem:[%s1060 + $0xb0] sm:$0xff]
    %v1084 = vld [vmem:[%s1060 + $0xb8] sm:$0xff]
    %v1085 = vld [vmem:[%s1060 + $0xc0] sm:$0xff]
    %v1086 = vld [vmem:[%s1060 + $0xc8] sm:$0xff]
    %v1087 = vld [vmem:[%s1060 + $0xd0] sm:$0xff]
    %v1088 = vld [vmem:[%s1060 + $0xd8] sm:$0xff]
    %v1089 = vld [vmem:[%s1060 + $0xe0] sm:$0xff]
    %v1090 = vld [vmem:[%s1060 + $0xe8] sm:$0xff]
    %v1091 = vld [vmem:[%s1060 + $0xf0] sm:$0xff]
    %v1092 = vld [vmem:[%s1060 + $0xf8] sm:$0xff]
    %vm1099 = vcmask 1046528
    %v1100 = vrot.slane %v1056, 1
    %v1101 = vrot.slane %v480, 1
    %v1102 = vsel %vm1099, %v1100, %v1101
    %v1103 = vrot.slane %v1057, 1
    %v1104 = vrot.slane %v481, 1
    %v1105 = vsel %vm1099, %v1103, %v1104
    %v1106 = vrot.slane %v1058, 1
    %v1107 = vsel %vm1099, %v1101, %v1106
    %v1108 = vrot.slane %v1059, 1
    %v1109 = vsel %vm1099, %v1104, %v1108
    %v1148 = vunpack.c.l.b16 %v1061
    %v1149 = vunpack.c.h.b16 %v1061
    %v1150 = vunpack.c.l.b16 %v1062
    %v1151 = vunpack.c.h.b16 %v1062
    %v1152 = vunpack.c.l.b16 %v1063
    %v1153 = vunpack.c.h.b16 %v1063
    %v1154 = vunpack.c.l.b16 %v1064
    %v1155 = vunpack.c.h.b16 %v1064
    %v1156 = vunpack.c.l.b16 %v1065
    %v1157 = vunpack.c.h.b16 %v1065
    %v1158 = vunpack.c.l.b16 %v1066
    %v1159 = vunpack.c.h.b16 %v1066
    %v1160 = vunpack.c.l.b16 %v1067
    %v1161 = vunpack.c.h.b16 %v1067
    %v1162 = vunpack.c.l.b16 %v1068
    %v1163 = vunpack.c.h.b16 %v1068
    %v1164 = vunpack.c.l.b16 %v1069
    %v1165 = vunpack.c.h.b16 %v1069
    %v1166 = vunpack.c.l.b16 %v1070
    %v1167 = vunpack.c.h.b16 %v1070
    %v1168 = vunpack.c.l.b16 %v1071
    %v1169 = vunpack.c.h.b16 %v1071
    %v1170 = vunpack.c.l.b16 %v1072
    %v1171 = vunpack.c.h.b16 %v1072
    %v1172 = vunpack.c.l.b16 %v1073
    %v1173 = vunpack.c.h.b16 %v1073
    %v1174 = vunpack.c.l.b16 %v1074
    %v1175 = vunpack.c.h.b16 %v1074
    %v1176 = vunpack.c.l.b16 %v1075
    %v1177 = vunpack.c.h.b16 %v1075
    %v1178 = vunpack.c.l.b16 %v1076
    %v1179 = vunpack.c.h.b16 %v1076
    %v1180 = vunpack.c.l.b16 %v1077
    %v1181 = vunpack.c.h.b16 %v1077
    %v1182 = vunpack.c.l.b16 %v1078
    %v1183 = vunpack.c.h.b16 %v1078
    %v1184 = vunpack.c.l.b16 %v1079
    %v1185 = vunpack.c.h.b16 %v1079
    %v1186 = vunpack.c.l.b16 %v1080
    %v1187 = vunpack.c.h.b16 %v1080
    %v1188 = vunpack.c.l.b16 %v1081
    %v1189 = vunpack.c.h.b16 %v1081
    %v1190 = vunpack.c.l.b16 %v1082
    %v1191 = vunpack.c.h.b16 %v1082
    %v1192 = vunpack.c.l.b16 %v1083
    %v1193 = vunpack.c.h.b16 %v1083
    %v1194 = vunpack.c.l.b16 %v1084
    %v1195 = vunpack.c.h.b16 %v1084
    %v1196 = vunpack.c.l.b16 %v1085
    %v1197 = vunpack.c.h.b16 %v1085
    %v1198 = vunpack.c.l.b16 %v1086
    %v1199 = vunpack.c.h.b16 %v1086
    %v1200 = vunpack.c.l.b16 %v1087
    %v1201 = vunpack.c.h.b16 %v1087
    %v1202 = vunpack.c.l.b16 %v1088
    %v1203 = vunpack.c.h.b16 %v1088
    %v1204 = vunpack.c.l.b16 %v1089
    %v1205 = vunpack.c.h.b16 %v1089
    %v1206 = vunpack.c.l.b16 %v1090
    %v1207 = vunpack.c.h.b16 %v1090
    %v1208 = vunpack.c.l.b16 %v1091
    %v1209 = vunpack.c.h.b16 %v1091
    %v1210 = vunpack.c.l.b16 %v1092
    %v1211 = vunpack.c.h.b16 %v1092
    %v1212 = vpack.c.b16 %v1150, %v1148
    %v1213 = vpack.c.b16 %v1151, %v1149
    %v1214 = vpack.c.b16 %v1154, %v1152
    %v1215 = vpack.c.b16 %v1155, %v1153
    %v1216 = vpack.c.b16 %v1158, %v1156
    %v1217 = vpack.c.b16 %v1159, %v1157
    %v1218 = vpack.c.b16 %v1162, %v1160
    %v1219 = vpack.c.b16 %v1163, %v1161
    %v1220 = vpack.c.b16 %v1166, %v1164
    %v1221 = vpack.c.b16 %v1167, %v1165
    %v1222 = vpack.c.b16 %v1170, %v1168
    %v1223 = vpack.c.b16 %v1171, %v1169
    %v1224 = vpack.c.b16 %v1174, %v1172
    %v1225 = vpack.c.b16 %v1175, %v1173
    %v1226 = vpack.c.b16 %v1178, %v1176
    %v1227 = vpack.c.b16 %v1179, %v1177
    %v1228 = vpack.c.b16 %v1182, %v1180
    %v1229 = vpack.c.b16 %v1183, %v1181
    %v1230 = vpack.c.b16 %v1186, %v1184
    %v1231 = vpack.c.b16 %v1187, %v1185
    %v1232 = vpack.c.b16 %v1190, %v1188
    %v1233 = vpack.c.b16 %v1191, %v1189
    %v1234 = vpack.c.b16 %v1194, %v1192
    %v1235 = vpack.c.b16 %v1195, %v1193
    %v1236 = vpack.c.b16 %v1198, %v1196
    %v1237 = vpack.c.b16 %v1199, %v1197
    %v1238 = vpack.c.b16 %v1202, %v1200
    %v1239 = vpack.c.b16 %v1203, %v1201
    %v1240 = vpack.c.b16 %v1206, %v1204
    %v1241 = vpack.c.b16 %v1207, %v1205
    %v1242 = vpack.c.b16 %v1210, %v1208
    %v1243 = vpack.c.b16 %v1211, %v1209
    %1276 = vmatprep.subr.bf16.mxu0 %v1213
    %1277 = vmatpush1.bf16.msra.mxu0 %v1212
    %1278 = vmatprep.subr.bf16.mxu0 %v1215
    %1279 = vmatpush1.bf16.msra.mxu0 %v1214
    %1280 = vmatprep.subr.bf16.mxu0 %v1217
    %1281 = vmatpush1.bf16.msra.mxu0 %v1216
    %1282 = vmatprep.subr.bf16.mxu0 %v1219
    %1283 = vmatpush1.bf16.msra.mxu0 %v1218
    %1284 = vmatprep.subr.bf16.mxu0 %v1221
    %1285 = vmatpush1.bf16.msra.mxu0 %v1220
    %1286 = vmatprep.subr.bf16.mxu0 %v1223
    %1287 = vmatpush1.bf16.msra.mxu0 %v1222
    %1288 = vmatprep.subr.bf16.mxu0 %v1225
    %1289 = vmatpush1.bf16.msra.mxu0 %v1224
    %1290 = vmatprep.subr.bf16.mxu0 %v1227
    %1291 = vmatpush1.bf16.msra.mxu0 %v1226
    %1292 = vmatprep.subr.bf16.mxu0 %v1229
    %1293 = vmatpush1.bf16.msra.mxu0 %v1228
    %1294 = vmatprep.subr.bf16.mxu0 %v1231
    %1295 = vmatpush1.bf16.msra.mxu0 %v1230
    %1296 = vmatprep.subr.bf16.mxu0 %v1233
    %1297 = vmatpush1.bf16.msra.mxu0 %v1232
    %1298 = vmatprep.subr.bf16.mxu0 %v1235
    %1299 = vmatpush1.bf16.msra.mxu0 %v1234
    %1300 = vmatprep.subr.bf16.mxu0 %v1237
    %1301 = vmatpush1.bf16.msra.mxu0 %v1236
    %1302 = vmatprep.subr.bf16.mxu0 %v1239
    %1303 = vmatpush1.bf16.msra.mxu0 %v1238
    %1304 = vmatprep.subr.bf16.mxu0 %v1241
    %1305 = vmatpush1.bf16.msra.mxu0 %v1240
    %1306 = vmatprep.subr.bf16.mxu0 %v1243
    %1307 = vmatpush1.bf16.msra.mxu0 %v1242
    %1308 = vmatprep.mubr.bf16.mxu0 %v1105
    %1309 = vmatmul.mubr.bf16.gmra.mrb[0].mxu0 %v1102
    %v1310 = vpop.f32.mrb[0].mxu0
    %v1311 = vadd.f32 0.0, %v1310
    %v1312 = vpop.f32.mrb[0].mxu0
    %v1313 = vadd.f32 0.0, %v1312
    %v1314 = vpop.f32.mrb[0].mxu0
    %v1315 = vadd.f32 0.0, %v1314
    %v1316 = vpop.f32.mrb[0].mxu0
    %v1317 = vadd.f32 0.0, %v1316
    %1318 = vmatprep.mubr.bf16.mxu0 %v1109
    %1319 = vmatmul.mubr.bf16.gmra.mrb[0].mxu0 %v1107
    %v1320 = vpop.f32.mrb[0].mxu0
    %v1321 = vadd.f32 0.0, %v1320
    %v1322 = vpop.f32.mrb[0].mxu0
    %v1323 = vadd.f32 0.0, %v1322
    %v1324 = vpop.f32.mrb[0].mxu0
    %v1325 = vadd.f32 0.0, %v1324
    %v1326 = vpop.f32.mrb[0].mxu0
    %v1327 = vadd.f32 0.0, %v1326
    %1328 = vmatprep.mubr.bf16.mxu0 %v1108
    %1329 = vmatmul.mubr.bf16.gmra.mrb[0].mxu0 %v1106
    %v1330 = vpop.f32.mrb[0].mxu0
    %v1331 = vadd.f32 0.0, %v1330
    %v1332 = vpop.f32.mrb[0].mxu0
    %v1333 = vadd.f32 0.0, %v1332
    %v1334 = vpop.f32.mrb[0].mxu0
    %v1335 = vpop.f32.mrb[0].mxu0
    %1336 = vdwg.mxu0
    %v1337 = vadd.f32 %v1026, %v1311
    %v1338 = vadd.f32 %v1028, %v1313
    %v1339 = vadd.f32 %v1030, %v1315
    %v1340 = vadd.f32 %v1032, %v1317
    %v1341 = vadd.f32 %v1036, %v1321
    %v1342 = vadd.f32 %v1038, %v1323
    %v1343 = vadd.f32 %v1040, %v1325
    %v1344 = vadd.f32 %v1042, %v1327
    %v1345 = vadd.f32 %v1046, %v1331
    %v1346 = vadd.f32 %v1048, %v1333
    %v1347 = vld [vmem:[%s4] sm:$0x3]
    %v1349 = vlaneseq
    %v1350 = vshrl.u32 %v1349, 7
    %v1351 = vsub.s32 0, %v1350
    %v1352 = vrot.slane %v1347, %v1351
    %v1353 = vlaneseq
    %v1354 = vshrl.u32 %v1353, 7
    %v1355 = vsub.s32 1, %v1354
    %v1356 = vrot.slane %v1347, %v1355
    %v1359 = vadd.f32 %v1337, %v1352
    %v1360 = vadd.f32 %v1338, %v1356
    %v1361 = vadd.f32 %v1339, %v1352
    %v1362 = vadd.f32 %v1340, %v1356
    %v1363 = vadd.f32 %v1341, %v1352
    %v1364 = vadd.f32 %v1342, %v1356
    %v1365 = vadd.f32 %v1343, %v1352
    %v1366 = vadd.f32 %v1344, %v1356
    %v1367 = vadd.f32 %v1345, %v1352
    %v1368 = vadd.f32 %v1346, %v1356
    %v1369 = vmax.f32 %v1359, 0.0
    %v1370 = vmax.f32 %v1360, 0.0
    %v1371 = vmax.f32 %v1361, 0.0
    %v1372 = vmax.f32 %v1362, 0.0
    %v1373 = vmax.f32 %v1363, 0.0
    %v1374 = vmax.f32 %v1364, 0.0
    %v1375 = vmax.f32 %v1365, 0.0
    %v1376 = vmax.f32 %v1366, 0.0
    %v1377 = vmax.f32 %v1367, 0.0
    %v1378 = vmax.f32 %v1368, 0.0
    %1379 = vst [vmem:[%s5] sm:$0xff] %v1369
    %1380 = vst [vmem:[%s5 + $0x8] sm:$0xff] %v1370
    %1381 = vst [vmem:[%s5 + $0x10] sm:$0xff] %v1371
    %1382 = vst [vmem:[%s5 + $0x18] sm:$0xff] %v1372
    %v1389 = vrot.slane %v1373, 2
    %v1390 = vrot.slane %v1375, 2
    %v1391 = vsel %vm132, %v1389, %v1390
    %v1392 = vrot.slane %v1374, 2
    %v1393 = vrot.slane %v1376, 2
    %v1394 = vsel %vm132, %v1392, %v1393
    %v1395 = vrot.slane %v1377, 2
    %v1396 = vsel %vm132, %v1390, %v1395
    %v1397 = vrot.slane %v1378, 2
    %v1398 = vsel %vm132, %v1393, %v1397
    %s1403 = scalar_lea.vmem %s5, 32
    %1404 = vst [vmem:[%s1403] sm:$0xff] %v1391
    %1405 = vst [vmem:[%s1403 + $0x8] sm:$0xff] %v1394
    %1406 = vst [vmem:[%s1403 + $0x10] sm:$0xff] %v1396
    %1407 = vst [vmem:[%s1403 + $0x18] sm:$0xff] %v1398
    // Predicated region
    $region26: #{progressive_nn_forward.1} parent=1 // pred_check
      _
    $region27: #{progressive_nn_forward.1} parent=1 // pred_check_branch
      %1409 = sbr.rel (0) target = $region29
    $region28: #{progressive_nn_forward.1} parent=1 // pred_region
      _
    $region29: #{progressive_nn_forward.1} parent=1 // pred_fallthru
      _
    // Predicated region
    $region30: #{progressive_nn_forward.1} parent=1 // pred_check
      _
    $region31: #{progressive_nn_forward.1} parent=1 // pred_check_branch
      %1411 = sbr.rel (0) target = $region33
    $region32: #{progressive_nn_forward.1} parent=1 // pred_region
      _
    $region33: #{progressive_nn_forward.1} parent=1 // pred_fallthru
      _
    %1412 = vsyncpa [#allocation5], 1

</llo_original>
